<compile_context>
chip_gen: v7x
topology: tpu7x:2x2x1
jax: 0.10.0
libtpu: 0.0.40
codegen_flags: <defaults>
</compile_context>

<pallas_src>
import functools

import jax
import jax.numpy as jnp
from jax.experimental import pallas as pl
from jax.experimental.pallas import tpu as pltpu


def _round_up(x, m):
    return (x + m - 1) // m * m


def _pad2d(a, rows, cols):
    return jnp.pad(a, ((0, rows - a.shape[0]), (0, cols - a.shape[1])))


def _decoder_kernel(
    tok_ref,    # (B, 1)      int32  token ids
    h_ref,      # (B, Hp)     f32    previous hidden state (lane padded)
    emb_ref,    # (Vp, Ep)    f32    embedding table (padded)
    wi_ref,     # (Ep, 3*Hp)  f32    [w_ir | w_iz | w_in]
    wh_ref,     # (Hp, 3*Hp)  f32    [w_hr | w_hz | w_hn]
    bi_ref,     # (1, 3*Hp)   f32    [b_ir+b_hr | b_iz+b_hz | b_in]
    bhn_ref,    # (1, Hp)     f32    b_hn (kept separate: lives inside r*(.))
    wout_ref,   # (Hp, Vp)    f32
    bout_ref,   # (1, Vp)     f32    padded lanes = -1e30
    pred_ref,   # (B, Vp)     f32    log-softmax output
    hnew_ref,   # (B, Hp)     f32    new hidden state
):
    B = tok_ref.shape[0]
    Vp = emb_ref.shape[0]
    Hp = h_ref.shape[1]

    # Embedding lookup as an exact one-hot matmul on the MXU, then ReLU:
    #   x = relu(embedding[tokens])
    one_hot = (jax.lax.broadcasted_iota(jnp.int32, (B, Vp), 1)
               == tok_ref[...]).astype(jnp.float32)
    x = jnp.maximum(
        jnp.dot(one_hot, emb_ref[...], preferred_element_type=jnp.float32), 0.0)

    h = h_ref[...]

    # --- fused GRU gates (PyTorch gate order r, z, n) ---
    gi = jnp.dot(x, wi_ref[...], preferred_element_type=jnp.float32) + bi_ref[...]
    gh = jnp.dot(h, wh_ref[...], preferred_element_type=jnp.float32)

    rz = jax.nn.sigmoid(gi[:, : 2 * Hp] + gh[:, : 2 * Hp])   # one EUP pass for r and z
    r = rz[:, :Hp]
    z = rz[:, Hp:]
    n = jnp.tanh(gi[:, 2 * Hp:] + r * (gh[:, 2 * Hp:] + bhn_ref[...]))
    h_new = (1.0 - z) * n + z * h
    hnew_ref[...] = h_new

    # --- Linear + LogSoftmax(dim=1) ---
    # Padded vocab lanes carry a -1e30 bias -> exp(-huge) == 0 in the sum.
    logits = (jnp.dot(h_new, wout_ref[...], preferred_element_type=jnp.float32)
              + bout_ref[...])
    m = jnp.max(logits, axis=-1, keepdims=True)
    lse = m + jnp.log(jnp.sum(jnp.exp(logits - m), axis=-1, keepdims=True))
    pred_ref[...] = logits - lse


def decoder_forward(tokens, hidden, fp, *, out_dim):
    """tokens: (B,) int, hidden: (1, B, H) f32 -> (pred (B, out_dim), hidden (1, B, H))."""
    B = tokens.shape[0]
    H = hidden.shape[2]
    Hp = fp["w_h"].shape[0]
    Vp = fp["w_out"].shape[1]
    Bp = _round_up(B, 8)

    tok2d = jnp.pad(tokens.astype(jnp.int32).reshape(B, 1), ((0, Bp - B), (0, 0)))
    h0 = _pad2d(hidden[0], Bp, Hp)

    vmem = pl.BlockSpec(memory_space=pltpu.MemorySpace.VMEM)
    pred_p, h_new_p = pl.pallas_call(
        _decoder_kernel,
        out_shape=(jax.ShapeDtypeStruct((Bp, Vp), jnp.float32),
                   jax.ShapeDtypeStruct((Bp, Hp), jnp.float32)),
        in_specs=[vmem] * 9,
        out_specs=(vmem, vmem),
        input_output_aliases={1: 1},   # new hidden reuses the old hidden buffer
    )(tok2d, h0, fp["embedding"], fp["w_i"], fp["w_h"],
      fp["b_i"], fp["b_hn"], fp["w_out"], fp["b_out"])

    pred = pred_p[:B, :out_dim]
    h_new = h_new_p[:B, :H]
    return pred, h_new[None]   # hidden back to (num_layers=1, B, H)


def init_params(key, output_dim, hidden_dim, embbed_dim):
    """Raw per-gate parameters, mirroring the PyTorch module's parameterization."""
    ks = jax.random.split(key, 16)
    f32 = jnp.float32
    return {
        "embedding": jax.random.normal(ks[0], (output_dim, embbed_dim), f32) * 0.1,
        # GRU input->hidden weights, transposed to (E, H) per gate (r, z, n)
        "w_ir_t": jax.random.normal(ks[1], (embbed_dim, hidden_dim), f32) * 0.1,
        "w_iz_t": jax.random.normal(ks[2], (embbed_dim, hidden_dim), f32) * 0.1,
        "w_in_t": jax.random.normal(ks[3], (embbed_dim, hidden_dim), f32) * 0.1,
        # GRU hidden->hidden weights, transposed to (H, H) per gate
        "w_hr_t": jax.random.normal(ks[4], (hidden_dim, hidden_dim), f32) * 0.1,
        "w_hz_t": jax.random.normal(ks[5], (hidden_dim, hidden_dim), f32) * 0.1,
        "w_hn_t": jax.random.normal(ks[6], (hidden_dim, hidden_dim), f32) * 0.1,
        # GRU biases (2-D (1, H) for broadcasting)
        "b_ir": jax.random.normal(ks[7], (1, hidden_dim), f32) * 0.1,
        "b_iz": jax.random.normal(ks[8], (1, hidden_dim), f32) * 0.1,
        "b_in": jax.random.normal(ks[9], (1, hidden_dim), f32) * 0.1,
        "b_hr": jax.random.normal(ks[10], (1, hidden_dim), f32) * 0.1,
        "b_hz": jax.random.normal(ks[11], (1, hidden_dim), f32) * 0.1,
        "b_hn": jax.random.normal(ks[12], (1, hidden_dim), f32) * 0.1,
        # Output Linear, transposed to (H, V)
        "w_out_t": jax.random.normal(ks[13], (hidden_dim, output_dim), f32) * 0.1,
        "b_out": jax.random.normal(ks[14], (1, output_dim), f32) * 0.1,
    }


def fuse_params(raw, output_dim, hidden_dim, embbed_dim):
    """Fuse + lane-pad the raw parameters into the kernel's layout (one-time cost)."""
    Hp = _round_up(hidden_dim, 128)
    Ep = _round_up(embbed_dim, 128)
    Vp = _round_up(output_dim, 128)
    return {
        "embedding": _pad2d(raw["embedding"], Vp, Ep),
        "w_i": jnp.concatenate([_pad2d(raw["w_ir_t"], Ep, Hp),
                                _pad2d(raw["w_iz_t"], Ep, Hp),
                                _pad2d(raw["w_in_t"], Ep, Hp)], axis=1),
        "w_h": jnp.concatenate([_pad2d(raw["w_hr_t"], Hp, Hp),
                                _pad2d(raw["w_hz_t"], Hp, Hp),
                                _pad2d(raw["w_hn_t"], Hp, Hp)], axis=1),
        # r/z biases pre-summed; b_in in the third block; b_hn stays separate.
        "b_i": jnp.concatenate([_pad2d(raw["b_ir"] + raw["b_hr"], 1, Hp),
                                _pad2d(raw["b_iz"] + raw["b_hz"], 1, Hp),
                                _pad2d(raw["b_in"], 1, Hp)], axis=1),
        "b_hn": _pad2d(raw["b_hn"], 1, Hp),
        "w_out": _pad2d(raw["w_out_t"], Hp, Vp),
        "b_out": jnp.concatenate(
            [raw["b_out"],
             jnp.full((1, Vp - output_dim), -1e30, jnp.float32)], axis=1),
    }


def _reference_forward(tokens, hidden, p):
    """Pure-JAX reference mirroring the PyTorch forward exactly (raw params)."""
    x = jnp.maximum(p["embedding"][tokens], 0.0)
    h = hidden[0]
    r = jax.nn.sigmoid(x @ p["w_ir_t"] + p["b_ir"] + h @ p["w_hr_t"] + p["b_hr"])
    z = jax.nn.sigmoid(x @ p["w_iz_t"] + p["b_iz"] + h @ p["w_hz_t"] + p["b_hz"])
    n = jnp.tanh(x @ p["w_in_t"] + p["b_in"] + r * (h @ p["w_hn_t"] + p["b_hn"]))
    h_new = (1.0 - z) * n + z * h
    logits = h_new @ p["w_out_t"] + p["b_out"]
    pred = jax.nn.log_softmax(logits, axis=1)
    return pred, h_new[None]


if __name__ == "__main__":
    # Small shapes consistent with the module's forward:
    #   batch B=8, embed_dim E=32, hidden_dim H=32, output_dim (vocab) V=64
    B, E, H, V = 8, 32, 32, 64
    key = jax.random.PRNGKey(0)
    k_param, k_tok, k_hid = jax.random.split(key, 3)

    raw = init_params(k_param, output_dim=V, hidden_dim=H, embbed_dim=E)
    fused = fuse_params(raw, output_dim=V, hidden_dim=H, embbed_dim=E)

    tokens = jax.random.randint(k_tok, (B,), 0, V, dtype=jnp.int32)
    hidden = jax.random.normal(k_hid, (1, B, H), jnp.float32)  # (num_layers, B, H)

    fwd = jax.jit(functools.partial(decoder_forward, out_dim=V))
    pred, h_new = fwd(tokens, hidden, fused)
    jax.block_until_ready((pred, h_new))

    # Sanity check vs. pure-JAX reference of the PyTorch semantics.
    ref_pred, ref_h = _reference_forward(tokens, hidden, raw)
    assert pred.shape == (B, V) and h_new.shape == (1, B, H)
    assert jnp.allclose(pred, ref_pred, atol=1e-5, rtol=1e-5)
    assert jnp.allclose(h_new, ref_h, atol=1e-5, rtol=1e-5)

    print("KERNEL_OK")
</pallas_src>

<mosaic_0001>
module attributes {stable_mosaic.version = 11 : i64} {
  func.func @_decoder_kernel(%arg0: memref<8x1xi32, #tpu.memory_space<vmem>>, %arg1: memref<8x128xf32, #tpu.memory_space<vmem>>, %arg2: memref<128x128xf32, #tpu.memory_space<vmem>>, %arg3: memref<128x384xf32, #tpu.memory_space<vmem>>, %arg4: memref<128x384xf32, #tpu.memory_space<vmem>>, %arg5: memref<1x384xf32, #tpu.memory_space<vmem>>, %arg6: memref<1x128xf32, #tpu.memory_space<vmem>>, %arg7: memref<128x128xf32, #tpu.memory_space<vmem>>, %arg8: memref<1x128xf32, #tpu.memory_space<vmem>>, %arg9: memref<8x128xf32, #tpu.memory_space<vmem>>, %arg10: memref<8x128xf32, #tpu.memory_space<vmem>>) attributes {dimension_semantics = [], scalar_prefetch = 0 : i64, scratch_operands = 0 : i64, tpu.core_type = #tpu.core_type<tc>} {
    %0 = tpu.iota {dimensions = array<i32: 1>} : vector<8x128xi32>
    %c0 = arith.constant 0 : index
    %c0_0 = arith.constant 0 : index
    %1 = vector.load %arg0[%c0, %c0_0] : memref<8x1xi32, #tpu.memory_space<vmem>>, vector<8x1xi32>
    %2 = vector.broadcast %1 : vector<8x1xi32> to vector<8x128xi32>
    %3 = arith.cmpi eq, %0, %2 : vector<8x128xi32>
    %4 = arith.extui %3 : vector<8x128xi1> to vector<8x128xi32>
    %5 = arith.sitofp %4 : vector<8x128xi32> to vector<8x128xf32>
    %c0_1 = arith.constant 0 : index
    %c0_2 = arith.constant 0 : index
    %6 = vector.load %arg2[%c0_1, %c0_2] : memref<128x128xf32, #tpu.memory_space<vmem>>, vector<128x128xf32>
    %cst = arith.constant dense<0.000000e+00> : vector<8x128xf32>
    %7 = tpu.matmul %5, %6, %cst {dimension_numbers = #tpu.dot_dimension_numbers<[1], [0], [0], [1], [0, 0, 1, 1], [], []>} : vector<8x128xf32>, vector<128x128xf32>, vector<8x128xf32> -> vector<8x128xf32>
    %cst_3 = arith.constant 0.000000e+00 : f32
    %8 = vector.broadcast %cst_3 : f32 to vector<8x128xf32>
    %9 = arith.maximumf %7, %8 : vector<8x128xf32>
    %c0_4 = arith.constant 0 : index
    %c0_5 = arith.constant 0 : index
    %10 = vector.load %arg1[%c0_4, %c0_5] : memref<8x128xf32, #tpu.memory_space<vmem>>, vector<8x128xf32>
    %c0_6 = arith.constant 0 : index
    %c0_7 = arith.constant 0 : index
    %11 = vector.load %arg3[%c0_6, %c0_7] : memref<128x384xf32, #tpu.memory_space<vmem>>, vector<128x384xf32>
    %cst_8 = arith.constant dense<0.000000e+00> : vector<8x384xf32>
    %12 = tpu.matmul %9, %11, %cst_8 {dimension_numbers = #tpu.dot_dimension_numbers<[1], [0], [0], [1], [0, 0, 1, 1], [], []>} : vector<8x128xf32>, vector<128x384xf32>, vector<8x384xf32> -> vector<8x384xf32>
    %c0_9 = arith.constant 0 : index
    %c0_10 = arith.constant 0 : index
    %13 = vector.load %arg5[%c0_9, %c0_10] : memref<1x384xf32, #tpu.memory_space<vmem>>, vector<1x384xf32>
    %14 = vector.broadcast %13 : vector<1x384xf32> to vector<8x384xf32>
    %15 = arith.addf %12, %14 : vector<8x384xf32>
    %c0_11 = arith.constant 0 : index
    %c0_12 = arith.constant 0 : index
    %16 = vector.load %arg4[%c0_11, %c0_12] : memref<128x384xf32, #tpu.memory_space<vmem>>, vector<128x384xf32>
    %cst_13 = arith.constant dense<0.000000e+00> : vector<8x384xf32>
    %17 = tpu.matmul %10, %16, %cst_13 {dimension_numbers = #tpu.dot_dimension_numbers<[1], [0], [0], [1], [0, 0, 1, 1], [], []>} : vector<8x128xf32>, vector<128x384xf32>, vector<8x384xf32> -> vector<8x384xf32>
    %18 = vector.extract_strided_slice %15 {offsets = [0, 0], sizes = [8, 256], strides = [1, 1]} : vector<8x384xf32> to vector<8x256xf32>
    %19 = vector.extract_strided_slice %17 {offsets = [0, 0], sizes = [8, 256], strides = [1, 1]} : vector<8x384xf32> to vector<8x256xf32>
    %20 = arith.addf %18, %19 : vector<8x256xf32>
    %21 = arith.negf %20 : vector<8x256xf32>
    %22 = math.exp %21 : vector<8x256xf32>
    %cst_14 = arith.constant 1.000000e+00 : f32
    %23 = vector.broadcast %cst_14 : f32 to vector<8x256xf32>
    %24 = arith.addf %23, %22 : vector<8x256xf32>
    %25 = arith.divf %23, %24 : vector<8x256xf32>
    %26 = vector.extract_strided_slice %25 {offsets = [0, 0], sizes = [8, 128], strides = [1, 1]} : vector<8x256xf32> to vector<8x128xf32>
    %27 = vector.extract_strided_slice %25 {offsets = [0, 128], sizes = [8, 128], strides = [1, 1]} : vector<8x256xf32> to vector<8x128xf32>
    %28 = vector.extract_strided_slice %15 {offsets = [0, 256], sizes = [8, 128], strides = [1, 1]} : vector<8x384xf32> to vector<8x128xf32>
    %29 = vector.extract_strided_slice %17 {offsets = [0, 256], sizes = [8, 128], strides = [1, 1]} : vector<8x384xf32> to vector<8x128xf32>
    %c0_15 = arith.constant 0 : index
    %c0_16 = arith.constant 0 : index
    %30 = vector.load %arg6[%c0_15, %c0_16] : memref<1x128xf32, #tpu.memory_space<vmem>>, vector<1x128xf32>
    %31 = vector.broadcast %30 : vector<1x128xf32> to vector<8x128xf32>
    %32 = arith.addf %29, %31 : vector<8x128xf32>
    %33 = arith.mulf %26, %32 : vector<8x128xf32>
    %34 = arith.addf %28, %33 : vector<8x128xf32>
    %35 = math.tanh %34 : vector<8x128xf32>
    %cst_17 = arith.constant 1.000000e+00 : f32
    %36 = vector.broadcast %cst_17 : f32 to vector<8x128xf32>
    %37 = arith.subf %36, %27 : vector<8x128xf32>
    %38 = arith.mulf %37, %35 : vector<8x128xf32>
    %39 = arith.mulf %27, %10 : vector<8x128xf32>
    %40 = arith.addf %38, %39 : vector<8x128xf32>
    %c0_18 = arith.constant 0 : index
    %c0_19 = arith.constant 0 : index
    %41 = vector.load %arg10[%c0_18, %c0_19] : memref<8x128xf32, #tpu.memory_space<vmem>>, vector<8x128xf32>
    tpu.vector_store %arg10[%c0_18, %c0_19], %40 {strides = array<i32>} : memref<8x128xf32, #tpu.memory_space<vmem>>, vector<8x128xf32>,
    %c0_20 = arith.constant 0 : index
    %c0_21 = arith.constant 0 : index
    %42 = vector.load %arg7[%c0_20, %c0_21] : memref<128x128xf32, #tpu.memory_space<vmem>>, vector<128x128xf32>
    %cst_22 = arith.constant dense<0.000000e+00> : vector<8x128xf32>
    %43 = tpu.matmul %40, %42, %cst_22 {dimension_numbers = #tpu.dot_dimension_numbers<[1], [0], [0], [1], [0, 0, 1, 1], [], []>} : vector<8x128xf32>, vector<128x128xf32>, vector<8x128xf32> -> vector<8x128xf32>
    %c0_23 = arith.constant 0 : index
    %c0_24 = arith.constant 0 : index
    %44 = vector.load %arg8[%c0_23, %c0_24] : memref<1x128xf32, #tpu.memory_space<vmem>>, vector<1x128xf32>
    %45 = vector.broadcast %44 : vector<1x128xf32> to vector<8x128xf32>
    %46 = arith.addf %43, %45 : vector<8x128xf32>
    %cst_25 = arith.constant dense<0xFF800000> : vector<8xf32>
    %47 = vector.multi_reduction <maximumf>, %46, %cst_25 [1] : vector<8x128xf32> to vector<8xf32>
    %48 = vector.shape_cast %47 : vector<8xf32> to vector<8x1xf32>
    %49 = vector.broadcast %48 : vector<8x1xf32> to vector<8x128xf32>
    %50 = arith.subf %46, %49 : vector<8x128xf32>
    %51 = math.exp %50 : vector<8x128xf32>
    %cst_26 = arith.constant dense<0.000000e+00> : vector<8xf32>
    %52 = vector.multi_reduction <add>, %51, %cst_26 [1] : vector<8x128xf32> to vector<8xf32>
    %53 = vector.shape_cast %52 : vector<8xf32> to vector<8x1xf32>
    %54 = math.log %53 : vector<8x1xf32>
    %55 = arith.addf %48, %54 : vector<8x1xf32>
    %56 = vector.broadcast %55 : vector<8x1xf32> to vector<8x128xf32>
    %57 = arith.subf %46, %56 : vector<8x128xf32>
    %c0_27 = arith.constant 0 : index
    %c0_28 = arith.constant 0 : index
    %58 = vector.load %arg9[%c0_27, %c0_28] : memref<8x128xf32, #tpu.memory_space<vmem>>, vector<8x128xf32>
    tpu.vector_store %arg9[%c0_27, %c0_28], %57 {strides = array<i32>} : memref<8x128xf32, #tpu.memory_space<vmem>>, vector<8x128xf32>,
    return
  }
}

</mosaic_0001>

<llo_original>
// kernel: decoder_forward.1
$region0: #{decoder_forward.1}
  #allocation0 [shape = 'u32[]', space=smem, size = 0x4, offset = 0x4, fixed_abs, tag = 'smem constant byte address 0x4 - core index']
  #allocation1 [shape = 'u32[144,128]{1,0:T(1,128)}', space=vmem, size = 0x12000, scoped, tag = 'internal scratch']
  %s0 = inlined_call_operand.vmem [shape: s32[8,1], index: 0, kind: input, shape index: {}]
  %s1 = inlined_call_operand.vmem [shape: f32[8,128], index: 1, kind: input, shape index: {}, may-alias: {1,10}]
  %s2 = inlined_call_operand.hbm [shape: f32[128,128], index: 2, kind: input, shape index: {}]
  %s3 = inlined_call_operand.hbm [shape: f32[128,384], index: 3, kind: input, shape index: {}]
  %s4 = inlined_call_operand.hbm [shape: f32[128,384], index: 4, kind: input, shape index: {}]
  %s5 = inlined_call_operand.vmem [shape: f32[1,384], index: 5, kind: input, shape index: {}]
  %s6 = inlined_call_operand.vmem [shape: f32[1,128], index: 6, kind: input, shape index: {}]
  %s7 = inlined_call_operand.hbm [shape: f32[128,128], index: 7, kind: input, shape index: {}]
  %s8 = inlined_call_operand.vmem [shape: f32[1,128], index: 8, kind: input, shape index: {}]
  %s9 = inlined_call_operand.hbm [shape: f32[8,128], index: 9, kind: output, shape index: {0}]
  %s10 = inlined_call_operand.vmem [shape: f32[8,128], index: 10, kind: output, shape index: {1}, may-alias: {1,10}]
  %11 = xla_tuple %s9, %s10
  %s12 = sld [smem:[#allocation0]]
  $region70: #{decoder_forward.1} parent=0
    _
  %s14 = ssub.s32 1, %s12
  %s15 = scalar_select 0, %s14, %s12
  $region1: #{decoder_forward.1} parent=0
    #allocation2 [shape = 'u8[65536]{0}', space=vmem, size = 0x10000, scoped, tag = 'input window, operand 2, single buffered']
    #allocation3 [shape = 's32[1]{0}', space=sflag, size = 0x4, scoped, tag = 'scoped memory for decoder_forward.1']
    #allocation4 [shape = 's32[1]{0}', space=sflag, size = 0x4, scoped, tag = 'scoped memory for decoder_forward.1']
    #allocation5 [shape = 'u8[196608]{0}', space=vmem, size = 0x30000, scoped, tag = 'input window, operand 3, single buffered']
    #allocation6 [shape = 's32[1]{0}', space=sflag, size = 0x4, scoped, tag = 'scoped memory for decoder_forward.1']
    #allocation7 [shape = 'u8[196608]{0}', space=vmem, size = 0x30000, scoped, tag = 'input window, operand 4, single buffered']
    #allocation8 [shape = 'u8[65536]{0}', space=vmem, size = 0x10000, scoped, tag = 'input window, operand 7, single buffered']
    #allocation9 [shape = 's32[1]{0}', space=sflag, size = 0x4, scoped, tag = 'scoped memory for decoder_forward.1']
    #allocation10 [shape = 'u8[4096]{0}', space=vmem, size = 0x1000, scoped, tag = 'output window, operand 0, single buffered']
    %16 = vsyncpa [#allocation3], 0
    %17 = vsyncpa [#allocation6], 0
    %18 = vsyncpa [#allocation9], 0
    %19 = vsyncpa [#allocation4], 0
    // Predicated region
    $region2: #{decoder_forward.1} parent=1 // pred_check
      _
    $region3: #{decoder_forward.1} parent=1 // pred_check_branch
      %21 = sbr.rel (0) target = $region5
    $region4: #{decoder_forward.1} parent=1 // pred_region
      _
    $region5: #{decoder_forward.1} parent=1 // pred_fallthru
      _
    // Predicated region
    $region6: #{decoder_forward.1} parent=1 // pred_check
      _
    $region7: #{decoder_forward.1} parent=1 // pred_check_branch
      %23 = sbr.rel (0) target = $region9
    $region8: #{decoder_forward.1} parent=1 // pred_region
      _
    $region9: #{decoder_forward.1} parent=1 // pred_fallthru
      _
    // Predicated region
    $region10: #{decoder_forward.1} parent=1 // pred_check
      _
    $region11: #{decoder_forward.1} parent=1 // pred_check_branch
      %25 = sbr.rel (0) target = $region13
    $region12: #{decoder_forward.1} parent=1 // pred_region
      %s27 = ssub.s32 2048, 2048
      %28 = vsyncadd [#allocation3], %s27
      %s29 = sshll.u32 [#allocation2], 4
      %s30 = int_to_ptr.vmem [resolvable:$true] %s29
      %35 = dma.hbm_to_vmem [thread:$0]  %s2, 2048, %s30, [#allocation3], 128, 128, 8
    $region13: #{decoder_forward.1} parent=1 // pred_fallthru
      _
    // Predicated region
    $region14: #{decoder_forward.1} parent=1 // pred_check
      _
    $region15: #{decoder_forward.1} parent=1 // pred_check_branch
      %37 = sbr.rel (0) target = $region17
    $region16: #{decoder_forward.1} parent=1 // pred_region
      %s39 = ssub.s32 6144, 6144
      %40 = vsyncadd [#allocation6], %s39
      %s41 = sshll.u32 [#allocation5], 4
      %s42 = int_to_ptr.vmem [resolvable:$true] %s41
      %47 = dma.hbm_to_vmem [thread:$0]  %s3, 6144, %s42, [#allocation6], 384, 384, 24
    $region17: #{decoder_forward.1} parent=1 // pred_fallthru
      _
    // Predicated region
    $region18: #{decoder_forward.1} parent=1 // pred_check
      _
    $region19: #{decoder_forward.1} parent=1 // pred_check_branch
      %49 = sbr.rel (0) target = $region21
    $region20: #{decoder_forward.1} parent=1 // pred_region
      %s51 = ssub.s32 6144, 6144
      %52 = vsyncadd [#allocation6], %s51
      %s53 = sshll.u32 [#allocation7], 4
      %s54 = int_to_ptr.vmem [resolvable:$true] %s53
      %59 = dma.hbm_to_vmem [thread:$0]  %s4, 6144, %s54, [#allocation6], 384, 384, 24
    $region21: #{decoder_forward.1} parent=1 // pred_fallthru
      _
    // Predicated region
    $region22: #{decoder_forward.1} parent=1 // pred_check
      _
    $region23: #{decoder_forward.1} parent=1 // pred_check_branch
      %61 = sbr.rel (0) target = $region25
    $region24: #{decoder_forward.1} parent=1 // pred_region
      _
    $region25: #{decoder_forward.1} parent=1 // pred_fallthru
      _
    // Predicated region
    $region26: #{decoder_forward.1} parent=1 // pred_check
      _
    $region27: #{decoder_forward.1} parent=1 // pred_check_branch
      %63 = sbr.rel (0) target = $region29
    $region28: #{decoder_forward.1} parent=1 // pred_region
      _
    $region29: #{decoder_forward.1} parent=1 // pred_fallthru
      _
    // Predicated region
    $region30: #{decoder_forward.1} parent=1 // pred_check
      _
    $region31: #{decoder_forward.1} parent=1 // pred_check_branch
      %65 = sbr.rel (0) target = $region33
    $region32: #{decoder_forward.1} parent=1 // pred_region
      %s67 = ssub.s32 2048, 2048
      %68 = vsyncadd [#allocation9], %s67
      %s69 = sshll.u32 [#allocation8], 4
      %s70 = int_to_ptr.vmem [resolvable:$true] %s69
      %75 = dma.hbm_to_vmem [thread:$0]  %s7, 2048, %s70, [#allocation9], 128, 128, 8
    $region33: #{decoder_forward.1} parent=1 // pred_fallthru
      _
    // Predicated region
    $region34: #{decoder_forward.1} parent=1 // pred_check
      _
    $region35: #{decoder_forward.1} parent=1 // pred_check_branch
      %77 = sbr.rel (0) target = $region37
    $region36: #{decoder_forward.1} parent=1 // pred_region
      _
    $region37: #{decoder_forward.1} parent=1 // pred_fallthru
      _
    // Predicated region
    $region38: #{decoder_forward.1} parent=1 // pred_check
      _
    $region39: #{decoder_forward.1} parent=1 // pred_check_branch
      %79 = sbr.rel (0) target = $region41
    $region40: #{decoder_forward.1} parent=1 // pred_region
      %80 = dma.done [#allocation3], 2048
    $region41: #{decoder_forward.1} parent=1 // pred_fallthru
      _
    // Predicated region
    $region42: #{decoder_forward.1} parent=1 // pred_check
      _
    $region43: #{decoder_forward.1} parent=1 // pred_check_branch
      %82 = sbr.rel (0) target = $region45
    $region44: #{decoder_forward.1} parent=1 // pred_region
      %83 = dma.done [#allocation6], 6144
    $region45: #{decoder_forward.1} parent=1 // pred_fallthru
      _
    // Predicated region
    $region46: #{decoder_forward.1} parent=1 // pred_check
      _
    $region47: #{decoder_forward.1} parent=1 // pred_check_branch
      %85 = sbr.rel (0) target = $region49
    $region48: #{decoder_forward.1} parent=1 // pred_region
      %86 = dma.done [#allocation6], 6144
    $region49: #{decoder_forward.1} parent=1 // pred_fallthru
      _
    // Predicated region
    $region50: #{decoder_forward.1} parent=1 // pred_check
      _
    $region51: #{decoder_forward.1} parent=1 // pred_check_branch
      %88 = sbr.rel (0) target = $region53
    $region52: #{decoder_forward.1} parent=1 // pred_region
      %89 = dma.done [#allocation9], 2048
    $region53: #{decoder_forward.1} parent=1 // pred_fallthru
      _
    %v90 = vlaneseq
    %v91 = vand.u32 %v90, 127
    %v92 = vld [vmem:[%s0] sm:$0xff]
    %93 = vset.pattern.permute.xlu0 0
    %94 = vperm.xlu0 %93, %v92
    %v95 = vpop.permute.xlu0 %94
    %vm96 = vcmp.eq.s32.totalorder %v91, %v95
    %v97 = vsel %vm96, 1, 0
    %v98 = vcvt.s32.f32 %v97
    %v99 = vld [vmem:[#allocation2] sm:$0xff]
    %v100 = vld [vmem:[#allocation2 + $0x8] sm:$0xff]
    %v101 = vld [vmem:[#allocation2 + $0x10] sm:$0xff]
    %v102 = vld [vmem:[#allocation2 + $0x18] sm:$0xff]
    %v103 = vld [vmem:[#allocation2 + $0x20] sm:$0xff]
    %v104 = vld [vmem:[#allocation2 + $0x28] sm:$0xff]
    %v105 = vld [vmem:[#allocation2 + $0x30] sm:$0xff]
    %v106 = vld [vmem:[#allocation2 + $0x38] sm:$0xff]
    %v107 = vld [vmem:[#allocation2 + $0x40] sm:$0xff]
    %v108 = vld [vmem:[#allocation2 + $0x48] sm:$0xff]
    %v109 = vld [vmem:[#allocation2 + $0x50] sm:$0xff]
    %v110 = vld [vmem:[#allocation2 + $0x58] sm:$0xff]
    %v111 = vld [vmem:[#allocation2 + $0x60] sm:$0xff]
    %v112 = vld [vmem:[#allocation2 + $0x68] sm:$0xff]
    %v113 = vld [vmem:[#allocation2 + $0x70] sm:$0xff]
    %v114 = vld [vmem:[#allocation2 + $0x78] sm:$0xff]
    %115 = vmatprep.subr.mxu0 0.0
    %116 = vmatpush1.msra.mxu0 %v99
    %117 = vmatprep.subr.mxu0 0.0
    %118 = vmatpush1.msra.mxu0 %v100
    %119 = vmatprep.subr.mxu0 0.0
    %120 = vmatpush1.msra.mxu0 %v101
    %121 = vmatprep.subr.mxu0 0.0
    %122 = vmatpush1.msra.mxu0 %v102
    %123 = vmatprep.subr.mxu0 0.0
    %124 = vmatpush1.msra.mxu0 %v103
    %125 = vmatprep.subr.mxu0 0.0
    %126 = vmatpush1.msra.mxu0 %v104
    %127 = vmatprep.subr.mxu0 0.0
    %128 = vmatpush1.msra.mxu0 %v105
    %129 = vmatprep.subr.mxu0 0.0
    %130 = vmatpush1.msra.mxu0 %v106
    %131 = vmatprep.subr.mxu0 0.0
    %132 = vmatpush1.msra.mxu0 %v107
    %133 = vmatprep.subr.mxu0 0.0
    %134 = vmatpush1.msra.mxu0 %v108
    %135 = vmatprep.subr.mxu0 0.0
    %136 = vmatpush1.msra.mxu0 %v109
    %137 = vmatprep.subr.mxu0 0.0
    %138 = vmatpush1.msra.mxu0 %v110
    %139 = vmatprep.subr.mxu0 0.0
    %140 = vmatpush1.msra.mxu0 %v111
    %141 = vmatprep.subr.mxu0 0.0
    %142 = vmatpush1.msra.mxu0 %v112
    %143 = vmatprep.subr.mxu0 0.0
    %144 = vmatpush1.msra.mxu0 %v113
    %145 = vmatprep.subr.mxu0 0.0
    %146 = vmatpush1.msra.mxu0 %v114
    %147 = vmatprep.subr.mxu0 0.0
    %148 = vmatpush1.msra.mxu0 0.0
    %149 = vmatprep.subr.mxu0 0.0
    %150 = vmatpush1.msra.mxu0 0.0
    %151 = vmatprep.subr.mxu0 0.0
    %152 = vmatpush1.msra.mxu0 0.0
    %153 = vmatprep.subr.mxu0 0.0
    %154 = vmatpush1.msra.mxu0 0.0
    %155 = vmatprep.subr.mxu0 0.0
    %156 = vmatpush1.msra.mxu0 0.0
    %157 = vmatprep.subr.mxu0 0.0
    %158 = vmatpush1.msra.mxu0 0.0
    %159 = vmatprep.subr.mxu0 0.0
    %160 = vmatpush1.msra.mxu0 0.0
    %161 = vmatprep.subr.mxu0 0.0
    %162 = vmatpush1.msra.mxu0 0.0
    %163 = vmatprep.subr.mxu0 0.0
    %164 = vmatpush1.msra.mxu0 0.0
    %165 = vmatprep.subr.mxu0 0.0
    %166 = vmatpush1.msra.mxu0 0.0
    %167 = vmatprep.subr.mxu0 0.0
    %168 = vmatpush1.msra.mxu0 0.0
    %169 = vmatprep.subr.mxu0 0.0
    %170 = vmatpush1.msra.mxu0 0.0
    %171 = vmatprep.subr.mxu0 0.0
    %172 = vmatpush1.msra.mxu0 0.0
    %173 = vmatprep.subr.mxu0 0.0
    %174 = vmatpush1.msra.mxu0 0.0
    %175 = vmatprep.subr.mxu0 0.0
    %176 = vmatpush1.msra.mxu0 0.0
    %177 = vmatprep.subr.mxu0 0.0
    %178 = vmatpush1.msra.mxu0 0.0
    %179 = vmatprep.mubr.f32.mxu0 0.0
    %180 = vmatmul.mubr.f32.gmra.mrb[0].mxu0 %v98
    %v181 = vpop.f32.mrb[0].mxu0
    %v182 = vadd.f32 0.0, %v181
    %v183 = vpop.f32.mrb[0].mxu0
    %184 = vdwg.mxu0
    %v185 = vmax.f32 %v182, 0.0
    %v186 = vld [vmem:[%s1] sm:$0xff]
    %v187 = vld [vmem:[#allocation5] sm:$0xff]
    %v188 = vld [vmem:[#allocation5 + $0x8] sm:$0xff]
    %v189 = vld [vmem:[#allocation5 + $0x10] sm:$0xff]
    %v190 = vld [vmem:[#allocation5 + $0x18] sm:$0xff]
    %v191 = vld [vmem:[#allocation5 + $0x20] sm:$0xff]
    %v192 = vld [vmem:[#allocation5 + $0x28] sm:$0xff]
    %v193 = vld [vmem:[#allocation5 + $0x30] sm:$0xff]
    %v194 = vld [vmem:[#allocation5 + $0x38] sm:$0xff]
    %v195 = vld [vmem:[#allocation5 + $0x40] sm:$0xff]
    %v196 = vld [vmem:[#allocation5 + $0x48] sm:$0xff]
    %v197 = vld [vmem:[#allocation5 + $0x50] sm:$0xff]
    %v198 = vld [vmem:[#allocation5 + $0x58] sm:$0xff]
    %v199 = vld [vmem:[#allocation5 + $0x60] sm:$0xff]
    %v200 = vld [vmem:[#allocation5 + $0x68] sm:$0xff]
    %v201 = vld [vmem:[#allocation5 + $0x70] sm:$0xff]
    %v202 = vld [vmem:[#allocation5 + $0x78] sm:$0xff]
    %v203 = vld [vmem:[#allocation5 + $0x80] sm:$0xff]
    %v204 = vld [vmem:[#allocation5 + $0x88] sm:$0xff]
    %v205 = vld [vmem:[#allocation5 + $0x90] sm:$0xff]
    %v206 = vld [vmem:[#allocation5 + $0x98] sm:$0xff]
    %v207 = vld [vmem:[#allocation5 + $0xa0] sm:$0xff]
    %v208 = vld [vmem:[#allocation5 + $0xa8] sm:$0xff]
    %v209 = vld [vmem:[#allocation5 + $0xb0] sm:$0xff]
    %v210 = vld [vmem:[#allocation5 + $0xb8] sm:$0xff]
    %v211 = vld [vmem:[#allocation5 + $0xc0] sm:$0xff]
    %v212 = vld [vmem:[#allocation5 + $0xc8] sm:$0xff]
    %v213 = vld [vmem:[#allocation5 + $0xd0] sm:$0xff]
    %v214 = vld [vmem:[#allocation5 + $0xd8] sm:$0xff]
    %v215 = vld [vmem:[#allocation5 + $0xe0] sm:$0xff]
    %v216 = vld [vmem:[#allocation5 + $0xe8] sm:$0xff]
    %v217 = vld [vmem:[#allocation5 + $0xf0] sm:$0xff]
    %v218 = vld [vmem:[#allocation5 + $0xf8] sm:$0xff]
    %v219 = vld [vmem:[#allocation5 + $0x100] sm:$0xff]
    %v220 = vld [vmem:[#allocation5 + $0x108] sm:$0xff]
    %v221 = vld [vmem:[#allocation5 + $0x110] sm:$0xff]
    %v222 = vld [vmem:[#allocation5 + $0x118] sm:$0xff]
    %v223 = vld [vmem:[#allocation5 + $0x120] sm:$0xff]
    %v224 = vld [vmem:[#allocation5 + $0x128] sm:$0xff]
    %v225 = vld [vmem:[#allocation5 + $0x130] sm:$0xff]
    %v226 = vld [vmem:[#allocation5 + $0x138] sm:$0xff]
    %v227 = vld [vmem:[#allocation5 + $0x140] sm:$0xff]
    %v228 = vld [vmem:[#allocation5 + $0x148] sm:$0xff]
    %v229 = vld [vmem:[#allocation5 + $0x150] sm:$0xff]
    %v230 = vld [vmem:[#allocation5 + $0x158] sm:$0xff]
    %v231 = vld [vmem:[#allocation5 + $0x160] sm:$0xff]
    %v232 = vld [vmem:[#allocation5 + $0x168] sm:$0xff]
    %v233 = vld [vmem:[#allocation5 + $0x170] sm:$0xff]
    %v234 = vld [vmem:[#allocation5 + $0x178] sm:$0xff]
    %v235 = vld [vmem:[%s5] sm:$0x7]
    %v237 = vlaneseq
    %v238 = vshrl.u32 %v237, 7
    %v239 = vsub.s32 0, %v238
    %v240 = vrot.slane %v235, %v239
    %v241 = vlaneseq
    %v242 = vshrl.u32 %v241, 7
    %v243 = vsub.s32 1, %v242
    %v244 = vrot.slane %v235, %v243
    %v245 = vlaneseq
    %v246 = vshrl.u32 %v245, 7
    %v247 = vsub.s32 2, %v246
    %v248 = vrot.slane %v235, %v247
    %252 = vmatprep.subr.mxu0 %v188
    %253 = vmatpush1.msra.mxu0 %v187
    %254 = vmatprep.subr.mxu0 %v191
    %255 = vmatpush1.msra.mxu0 %v190
    %256 = vmatprep.subr.mxu0 %v194
    %257 = vmatpush1.msra.mxu0 %v193
    %258 = vmatprep.subr.mxu0 %v197
    %259 = vmatpush1.msra.mxu0 %v196
    %260 = vmatprep.subr.mxu0 %v200
    %261 = vmatpush1.msra.mxu0 %v199
    %262 = vmatprep.subr.mxu0 %v203
    %263 = vmatpush1.msra.mxu0 %v202
    %264 = vmatprep.subr.mxu0 %v206
    %265 = vmatpush1.msra.mxu0 %v205
    %266 = vmatprep.subr.mxu0 %v209
    %267 = vmatpush1.msra.mxu0 %v208
    %268 = vmatprep.subr.mxu0 %v212
    %269 = vmatpush1.msra.mxu0 %v211
    %270 = vmatprep.subr.mxu0 %v215
    %271 = vmatpush1.msra.mxu0 %v214
    %272 = vmatprep.subr.mxu0 %v218
    %273 = vmatpush1.msra.mxu0 %v217
    %274 = vmatprep.subr.mxu0 %v221
    %275 = vmatpush1.msra.mxu0 %v220
    %276 = vmatprep.subr.mxu0 %v224
    %277 = vmatpush1.msra.mxu0 %v223
    %278 = vmatprep.subr.mxu0 %v227
    %279 = vmatpush1.msra.mxu0 %v226
    %280 = vmatprep.subr.mxu0 %v230
    %281 = vmatpush1.msra.mxu0 %v229
    %282 = vmatprep.subr.mxu0 %v233
    %283 = vmatpush1.msra.mxu0 %v232
    %284 = vmatprep.subr.mxu0 0.0
    %285 = vmatpush1.msra.mxu0 0.0
    %286 = vmatprep.subr.mxu0 0.0
    %287 = vmatpush1.msra.mxu0 0.0
    %288 = vmatprep.subr.mxu0 0.0
    %289 = vmatpush1.msra.mxu0 0.0
    %290 = vmatprep.subr.mxu0 0.0
    %291 = vmatpush1.msra.mxu0 0.0
    %292 = vmatprep.subr.mxu0 0.0
    %293 = vmatpush1.msra.mxu0 0.0
    %294 = vmatprep.subr.mxu0 0.0
    %295 = vmatpush1.msra.mxu0 0.0
    %296 = vmatprep.subr.mxu0 0.0
    %297 = vmatpush1.msra.mxu0 0.0
    %298 = vmatprep.subr.mxu0 0.0
    %299 = vmatpush1.msra.mxu0 0.0
    %300 = vmatprep.subr.mxu0 0.0
    %301 = vmatpush1.msra.mxu0 0.0
    %302 = vmatprep.subr.mxu0 0.0
    %303 = vmatpush1.msra.mxu0 0.0
    %304 = vmatprep.subr.mxu0 0.0
    %305 = vmatpush1.msra.mxu0 0.0
    %306 = vmatprep.subr.mxu0 0.0
    %307 = vmatpush1.msra.mxu0 0.0
    %308 = vmatprep.subr.mxu0 0.0
    %309 = vmatpush1.msra.mxu0 0.0
    %310 = vmatprep.subr.mxu0 0.0
    %311 = vmatpush1.msra.mxu0 0.0
    %312 = vmatprep.subr.mxu0 0.0
    %313 = vmatpush1.msra.mxu0 0.0
    %314 = vmatprep.subr.mxu0 0.0
    %315 = vmatpush1.msra.mxu0 0.0
    %316 = vmatprep.mubr.f32.mxu0 0.0
    %317 = vmatmul.mubr.f32.gmra.mrb[0].mxu0 %v185
    %v318 = vpop.f32.mrb[0].mxu0
    %v319 = vadd.f32 %v240, %v318
    %v320 = vpop.f32.mrb[0].mxu0
    %v321 = vadd.f32 %v244, %v320
    %322 = vdwg.mxu0
    %323 = vmatprep.subr.mxu0 0.0
    %324 = vmatpush1.msra.mxu0 %v189
    %325 = vmatprep.subr.mxu0 0.0
    %326 = vmatpush1.msra.mxu0 %v192
    %327 = vmatprep.subr.mxu0 0.0
    %328 = vmatpush1.msra.mxu0 %v195
    %329 = vmatprep.subr.mxu0 0.0
    %330 = vmatpush1.msra.mxu0 %v198
    %331 = vmatprep.subr.mxu0 0.0
    %332 = vmatpush1.msra.mxu0 %v201
    %333 = vmatprep.subr.mxu0 0.0
    %334 = vmatpush1.msra.mxu0 %v204
    %335 = vmatprep.subr.mxu0 0.0
    %336 = vmatpush1.msra.mxu0 %v207
    %337 = vmatprep.subr.mxu0 0.0
    %338 = vmatpush1.msra.mxu0 %v210
    %339 = vmatprep.subr.mxu0 0.0
    %340 = vmatpush1.msra.mxu0 %v213
    %341 = vmatprep.subr.mxu0 0.0
    %342 = vmatpush1.msra.mxu0 %v216
    %343 = vmatprep.subr.mxu0 0.0
    %344 = vmatpush1.msra.mxu0 %v219
    %345 = vmatprep.subr.mxu0 0.0
    %346 = vmatpush1.msra.mxu0 %v222
    %347 = vmatprep.subr.mxu0 0.0
    %348 = vmatpush1.msra.mxu0 %v225
    %349 = vmatprep.subr.mxu0 0.0
    %350 = vmatpush1.msra.mxu0 %v228
    %351 = vmatprep.subr.mxu0 0.0
    %352 = vmatpush1.msra.mxu0 %v231
    %353 = vmatprep.subr.mxu0 0.0
    %354 = vmatpush1.msra.mxu0 %v234
    %355 = vmatprep.subr.mxu0 0.0
    %356 = vmatpush1.msra.mxu0 0.0
    %357 = vmatprep.subr.mxu0 0.0
    %358 = vmatpush1.msra.mxu0 0.0
    %359 = vmatprep.subr.mxu0 0.0
    %360 = vmatpush1.msra.mxu0 0.0
    %361 = vmatprep.subr.mxu0 0.0
    %362 = vmatpush1.msra.mxu0 0.0
    %363 = vmatprep.subr.mxu0 0.0
    %364 = vmatpush1.msra.mxu0 0.0
    %365 = vmatprep.subr.mxu0 0.0
    %366 = vmatpush1.msra.mxu0 0.0
    %367 = vmatprep.subr.mxu0 0.0
    %368 = vmatpush1.msra.mxu0 0.0
    %369 = vmatprep.subr.mxu0 0.0
    %370 = vmatpush1.msra.mxu0 0.0
    %371 = vmatprep.subr.mxu0 0.0
    %372 = vmatpush1.msra.mxu0 0.0
    %373 = vmatprep.subr.mxu0 0.0
    %374 = vmatpush1.msra.mxu0 0.0
    %375 = vmatprep.subr.mxu0 0.0
    %376 = vmatpush1.msra.mxu0 0.0
    %377 = vmatprep.subr.mxu0 0.0
    %378 = vmatpush1.msra.mxu0 0.0
    %379 = vmatprep.subr.mxu0 0.0
    %380 = vmatpush1.msra.mxu0 0.0
    %381 = vmatprep.subr.mxu0 0.0
    %382 = vmatpush1.msra.mxu0 0.0
    %383 = vmatprep.subr.mxu0 0.0
    %384 = vmatpush1.msra.mxu0 0.0
    %385 = vmatprep.subr.mxu0 0.0
    %386 = vmatpush1.msra.mxu0 0.0
    %387 = vmatprep.mubr.f32.mxu0 0.0
    %388 = vmatmul.mubr.f32.gmra.mrb[0].mxu0 %v185
    %v389 = vpop.f32.mrb[0].mxu0
    %v390 = vadd.f32 %v248, %v389
    %v391 = vpop.f32.mrb[0].mxu0
    %392 = vdwg.mxu0
    %v393 = vld [vmem:[#allocation7] sm:$0xff]
    %v394 = vld [vmem:[#allocation7 + $0x8] sm:$0xff]
    %v395 = vld [vmem:[#allocation7 + $0x10] sm:$0xff]
    %v396 = vld [vmem:[#allocation7 + $0x18] sm:$0xff]
    %v397 = vld [vmem:[#allocation7 + $0x20] sm:$0xff]
    %v398 = vld [vmem:[#allocation7 + $0x28] sm:$0xff]
    %v399 = vld [vmem:[#allocation7 + $0x30] sm:$0xff]
    %v400 = vld [vmem:[#allocation7 + $0x38] sm:$0xff]
    %v401 = vld [vmem:[#allocation7 + $0x40] sm:$0xff]
    %v402 = vld [vmem:[#allocation7 + $0x48] sm:$0xff]
    %v403 = vld [vmem:[#allocation7 + $0x50] sm:$0xff]
    %v404 = vld [vmem:[#allocation7 + $0x58] sm:$0xff]
    %v405 = vld [vmem:[#allocation7 + $0x60] sm:$0xff]
    %v406 = vld [vmem:[#allocation7 + $0x68] sm:$0xff]
    %v407 = vld [vmem:[#allocation7 + $0x70] sm:$0xff]
    %v408 = vld [vmem:[#allocation7 + $0x78] sm:$0xff]
    %v409 = vld [vmem:[#allocation7 + $0x80] sm:$0xff]
    %v410 = vld [vmem:[#allocation7 + $0x88] sm:$0xff]
    %v411 = vld [vmem:[#allocation7 + $0x90] sm:$0xff]
    %v412 = vld [vmem:[#allocation7 + $0x98] sm:$0xff]
    %v413 = vld [vmem:[#allocation7 + $0xa0] sm:$0xff]
    %v414 = vld [vmem:[#allocation7 + $0xa8] sm:$0xff]
    %v415 = vld [vmem:[#allocation7 + $0xb0] sm:$0xff]
    %v416 = vld [vmem:[#allocation7 + $0xb8] sm:$0xff]
    %v417 = vld [vmem:[#allocation7 + $0xc0] sm:$0xff]
    %v418 = vld [vmem:[#allocation7 + $0xc8] sm:$0xff]
    %v419 = vld [vmem:[#allocation7 + $0xd0] sm:$0xff]
    %v420 = vld [vmem:[#allocation7 + $0xd8] sm:$0xff]
    %v421 = vld [vmem:[#allocation7 + $0xe0] sm:$0xff]
    %v422 = vld [vmem:[#allocation7 + $0xe8] sm:$0xff]
    %v423 = vld [vmem:[#allocation7 + $0xf0] sm:$0xff]
    %v424 = vld [vmem:[#allocation7 + $0xf8] sm:$0xff]
    %v425 = vld [vmem:[#allocation7 + $0x100] sm:$0xff]
    %v426 = vld [vmem:[#allocation7 + $0x108] sm:$0xff]
    %v427 = vld [vmem:[#allocation7 + $0x110] sm:$0xff]
    %v428 = vld [vmem:[#allocation7 + $0x118] sm:$0xff]
    %v429 = vld [vmem:[#allocation7 + $0x120] sm:$0xff]
    %v430 = vld [vmem:[#allocation7 + $0x128] sm:$0xff]
    %v431 = vld [vmem:[#allocation7 + $0x130] sm:$0xff]
    %v432 = vld [vmem:[#allocation7 + $0x138] sm:$0xff]
    %v433 = vld [vmem:[#allocation7 + $0x140] sm:$0xff]
    %v434 = vld [vmem:[#allocation7 + $0x148] sm:$0xff]
    %v435 = vld [vmem:[#allocation7 + $0x150] sm:$0xff]
    %v436 = vld [vmem:[#allocation7 + $0x158] sm:$0xff]
    %v437 = vld [vmem:[#allocation7 + $0x160] sm:$0xff]
    %v438 = vld [vmem:[#allocation7 + $0x168] sm:$0xff]
    %v439 = vld [vmem:[#allocation7 + $0x170] sm:$0xff]
    %v440 = vld [vmem:[#allocation7 + $0x178] sm:$0xff]
    %441 = vmatprep.subr.mxu0 %v394
    %442 = vmatpush1.msra.mxu0 %v393
    %443 = vmatprep.subr.mxu0 %v397
    %444 = vmatpush1.msra.mxu0 %v396
    %445 = vmatprep.subr.mxu0 %v400
    %446 = vmatpush1.msra.mxu0 %v399
    %447 = vmatprep.subr.mxu0 %v403
    %448 = vmatpush1.msra.mxu0 %v402
    %449 = vmatprep.subr.mxu0 %v406
    %450 = vmatpush1.msra.mxu0 %v405
    %451 = vmatprep.subr.mxu0 %v409
    %452 = vmatpush1.msra.mxu0 %v408
    %453 = vmatprep.subr.mxu0 %v412
    %454 = vmatpush1.msra.mxu0 %v411
    %455 = vmatprep.subr.mxu0 %v415
    %456 = vmatpush1.msra.mxu0 %v414
    %457 = vmatprep.subr.mxu0 %v418
    %458 = vmatpush1.msra.mxu0 %v417
    %459 = vmatprep.subr.mxu0 %v421
    %460 = vmatpush1.msra.mxu0 %v420
    %461 = vmatprep.subr.mxu0 %v424
    %462 = vmatpush1.msra.mxu0 %v423
    %463 = vmatprep.subr.mxu0 %v427
    %464 = vmatpush1.msra.mxu0 %v426
    %465 = vmatprep.subr.mxu0 %v430
    %466 = vmatpush1.msra.mxu0 %v429
    %467 = vmatprep.subr.mxu0 %v433
    %468 = vmatpush1.msra.mxu0 %v432
    %469 = vmatprep.subr.mxu0 %v436
    %470 = vmatpush1.msra.mxu0 %v435
    %471 = vmatprep.subr.mxu0 %v439
    %472 = vmatpush1.msra.mxu0 %v438
    %473 = vmatprep.subr.mxu0 0.0
    %474 = vmatpush1.msra.mxu0 0.0
    %475 = vmatprep.subr.mxu0 0.0
    %476 = vmatpush1.msra.mxu0 0.0
    %477 = vmatprep.subr.mxu0 0.0
    %478 = vmatpush1.msra.mxu0 0.0
    %479 = vmatprep.subr.mxu0 0.0
    %480 = vmatpush1.msra.mxu0 0.0
    %481 = vmatprep.subr.mxu0 0.0
    %482 = vmatpush1.msra.mxu0 0.0
    %483 = vmatprep.subr.mxu0 0.0
    %484 = vmatpush1.msra.mxu0 0.0
    %485 = vmatprep.subr.mxu0 0.0
    %486 = vmatpush1.msra.mxu0 0.0
    %487 = vmatprep.subr.mxu0 0.0
    %488 = vmatpush1.msra.mxu0 0.0
    %489 = vmatprep.subr.mxu0 0.0
    %490 = vmatpush1.msra.mxu0 0.0
    %491 = vmatprep.subr.mxu0 0.0
    %492 = vmatpush1.msra.mxu0 0.0
    %493 = vmatprep.subr.mxu0 0.0
    %494 = vmatpush1.msra.mxu0 0.0
    %495 = vmatprep.subr.mxu0 0.0
    %496 = vmatpush1.msra.mxu0 0.0
    %497 = vmatprep.subr.mxu0 0.0
    %498 = vmatpush1.msra.mxu0 0.0
    %499 = vmatprep.subr.mxu0 0.0
    %500 = vmatpush1.msra.mxu0 0.0
    %501 = vmatprep.subr.mxu0 0.0
    %502 = vmatpush1.msra.mxu0 0.0
    %503 = vmatprep.subr.mxu0 0.0
    %504 = vmatpush1.msra.mxu0 0.0
    %505 = vmatprep.mubr.f32.mxu0 0.0
    %506 = vmatmul.mubr.f32.gmra.mrb[0].mxu0 %v186
    %v507 = vpop.f32.mrb[0].mxu0
    %v508 = vadd.f32 0.0, %v507
    %v509 = vpop.f32.mrb[0].mxu0
    %v510 = vadd.f32 0.0, %v509
    %511 = vdwg.mxu0
    %512 = vmatprep.subr.mxu0 0.0
    %513 = vmatpush1.msra.mxu0 %v395
    %514 = vmatprep.subr.mxu0 0.0
    %515 = vmatpush1.msra.mxu0 %v398
    %516 = vmatprep.subr.mxu0 0.0
    %517 = vmatpush1.msra.mxu0 %v401
    %518 = vmatprep.subr.mxu0 0.0
    %519 = vmatpush1.msra.mxu0 %v404
    %520 = vmatprep.subr.mxu0 0.0
    %521 = vmatpush1.msra.mxu0 %v407
    %522 = vmatprep.subr.mxu0 0.0
    %523 = vmatpush1.msra.mxu0 %v410
    %524 = vmatprep.subr.mxu0 0.0
    %525 = vmatpush1.msra.mxu0 %v413
    %526 = vmatprep.subr.mxu0 0.0
    %527 = vmatpush1.msra.mxu0 %v416
    %528 = vmatprep.subr.mxu0 0.0
    %529 = vmatpush1.msra.mxu0 %v419
    %530 = vmatprep.subr.mxu0 0.0
    %531 = vmatpush1.msra.mxu0 %v422
    %532 = vmatprep.subr.mxu0 0.0
    %533 = vmatpush1.msra.mxu0 %v425
    %534 = vmatprep.subr.mxu0 0.0
    %535 = vmatpush1.msra.mxu0 %v428
    %536 = vmatprep.subr.mxu0 0.0
    %537 = vmatpush1.msra.mxu0 %v431
    %538 = vmatprep.subr.mxu0 0.0
    %539 = vmatpush1.msra.mxu0 %v434
    %540 = vmatprep.subr.mxu0 0.0
    %541 = vmatpush1.msra.mxu0 %v437
    %542 = vmatprep.subr.mxu0 0.0
    %543 = vmatpush1.msra.mxu0 %v440
    %544 = vmatprep.subr.mxu0 0.0
    %545 = vmatpush1.msra.mxu0 0.0
    %546 = vmatprep.subr.mxu0 0.0
    %547 = vmatpush1.msra.mxu0 0.0
    %548 = vmatprep.subr.mxu0 0.0
    %549 = vmatpush1.msra.mxu0 0.0
    %550 = vmatprep.subr.mxu0 0.0
    %551 = vmatpush1.msra.mxu0 0.0
    %552 = vmatprep.subr.mxu0 0.0
    %553 = vmatpush1.msra.mxu0 0.0
    %554 = vmatprep.subr.mxu0 0.0
    %555 = vmatpush1.msra.mxu0 0.0
    %556 = vmatprep.subr.mxu0 0.0
    %557 = vmatpush1.msra.mxu0 0.0
    %558 = vmatprep.subr.mxu0 0.0
    %559 = vmatpush1.msra.mxu0 0.0
    %560 = vmatprep.subr.mxu0 0.0
    %561 = vmatpush1.msra.mxu0 0.0
    %562 = vmatprep.subr.mxu0 0.0
    %563 = vmatpush1.msra.mxu0 0.0
    %564 = vmatprep.subr.mxu0 0.0
    %565 = vmatpush1.msra.mxu0 0.0
    %566 = vmatprep.subr.mxu0 0.0
    %567 = vmatpush1.msra.mxu0 0.0
    %568 = vmatprep.subr.mxu0 0.0
    %569 = vmatpush1.msra.mxu0 0.0
    %570 = vmatprep.subr.mxu0 0.0
    %571 = vmatpush1.msra.mxu0 0.0
    %572 = vmatprep.subr.mxu0 0.0
    %573 = vmatpush1.msra.mxu0 0.0
    %574 = vmatprep.subr.mxu0 0.0
    %575 = vmatpush1.msra.mxu0 0.0
    %576 = vmatprep.mubr.f32.mxu0 0.0
    %577 = vmatmul.mubr.f32.gmra.mrb[0].mxu0 %v186
    %v578 = vpop.f32.mrb[0].mxu0
    %v579 = vadd.f32 0.0, %v578
    %v580 = vpop.f32.mrb[0].mxu0
    %581 = vdwg.mxu0
    %v582 = vadd.f32 %v319, %v508
    %v583 = vadd.f32 %v321, %v510
    %v584 = vxor.u32 %v582, 2147483648
    %v585 = vxor.u32 %v583, 2147483648
    %v586 = vmul.f32 %v584, 1.442695
    %v587 = vpow.pop %v586
    %v588 = vmul.f32 %v585, 1.442695
    %v589 = vpow.pop %v588
    %v590 = vadd.f32 %v587, 1.0
    %v591 = vadd.f32 %v589, 1.0
    %v592 = vrcp.pop %v590
    %v593 = vmul.f32 1.0, %v592
    %v594 = vrcp.pop %v591
    %v595 = vmul.f32 1.0, %v594
    %v596 = vld [vmem:[%s6] sm:$0x1]
    %v598 = vlaneseq
    %v599 = vshrl.u32 %v598, 7
    %v600 = vsub.s32 0, %v599
    %v601 = vrot.slane %v596, %v600
    %v603 = vadd.f32 %v579, %v601
    %v604 = vmul.f32 %v593, %v603
    %v605 = vadd.f32 %v390, %v604
    %v606 = vtanh.pop %v605
    %v607 = vsub.f32 1.0, %v595
    %v608 = vmul.f32 %v607, %v606
    %v609 = vmul.f32 %v595, %v186
    %v610 = vadd.f32 %v608, %v609
    %611 = vst [vmem:[%s10] sm:$0xff] %v610
    %v612 = vld [vmem:[#allocation8] sm:$0xff]
    %v613 = vld [vmem:[#allocation8 + $0x8] sm:$0xff]
    %v614 = vld [vmem:[#allocation8 + $0x10] sm:$0xff]
    %v615 = vld [vmem:[#allocation8 + $0x18] sm:$0xff]
    %v616 = vld [vmem:[#allocation8 + $0x20] sm:$0xff]
    %v617 = vld [vmem:[#allocation8 + $0x28] sm:$0xff]
    %v618 = vld [vmem:[#allocation8 + $0x30] sm:$0xff]
    %v619 = vld [vmem:[#allocation8 + $0x38] sm:$0xff]
    %v620 = vld [vmem:[#allocation8 + $0x40] sm:$0xff]
    %v621 = vld [vmem:[#allocation8 + $0x48] sm:$0xff]
    %v622 = vld [vmem:[#allocation8 + $0x50] sm:$0xff]
    %v623 = vld [vmem:[#allocation8 + $0x58] sm:$0xff]
    %v624 = vld [vmem:[#allocation8 + $0x60] sm:$0xff]
    %v625 = vld [vmem:[#allocation8 + $0x68] sm:$0xff]
    %v626 = vld [vmem:[#allocation8 + $0x70] sm:$0xff]
    %v627 = vld [vmem:[#allocation8 + $0x78] sm:$0xff]
    %v628 = vld [vmem:[%s8] sm:$0x1]
    %v630 = vlaneseq
    %v631 = vshrl.u32 %v630, 7
    %v632 = vsub.s32 0, %v631
    %v633 = vrot.slane %v628, %v632
    %635 = vmatprep.subr.mxu0 0.0
    %636 = vmatpush1.msra.mxu0 %v612
    %637 = vmatprep.subr.mxu0 0.0
    %638 = vmatpush1.msra.mxu0 %v613
    %639 = vmatprep.subr.mxu0 0.0
    %640 = vmatpush1.msra.mxu0 %v614
    %641 = vmatprep.subr.mxu0 0.0
    %642 = vmatpush1.msra.mxu0 %v615
    %643 = vmatprep.subr.mxu0 0.0
    %644 = vmatpush1.msra.mxu0 %v616
    %645 = vmatprep.subr.mxu0 0.0
    %646 = vmatpush1.msra.mxu0 %v617
    %647 = vmatprep.subr.mxu0 0.0
    %648 = vmatpush1.msra.mxu0 %v618
    %649 = vmatprep.subr.mxu0 0.0
    %650 = vmatpush1.msra.mxu0 %v619
    %651 = vmatprep.subr.mxu0 0.0
    %652 = vmatpush1.msra.mxu0 %v620
    %653 = vmatprep.subr.mxu0 0.0
    %654 = vmatpush1.msra.mxu0 %v621
    %655 = vmatprep.subr.mxu0 0.0
    %656 = vmatpush1.msra.mxu0 %v622
    %657 = vmatprep.subr.mxu0 0.0
    %658 = vmatpush1.msra.mxu0 %v623
    %659 = vmatprep.subr.mxu0 0.0
    %660 = vmatpush1.msra.mxu0 %v624
    %661 = vmatprep.subr.mxu0 0.0
    %662 = vmatpush1.msra.mxu0 %v625
    %663 = vmatprep.subr.mxu0 0.0
    %664 = vmatpush1.msra.mxu0 %v626
    %665 = vmatprep.subr.mxu0 0.0
    %666 = vmatpush1.msra.mxu0 %v627
    %667 = vmatprep.subr.mxu0 0.0
    %668 = vmatpush1.msra.mxu0 0.0
    %669 = vmatprep.subr.mxu0 0.0
    %670 = vmatpush1.msra.mxu0 0.0
    %671 = vmatprep.subr.mxu0 0.0
    %672 = vmatpush1.msra.mxu0 0.0
    %673 = vmatprep.subr.mxu0 0.0
    %674 = vmatpush1.msra.mxu0 0.0
    %675 = vmatprep.subr.mxu0 0.0
    %676 = vmatpush1.msra.mxu0 0.0
    %677 = vmatprep.subr.mxu0 0.0
    %678 = vmatpush1.msra.mxu0 0.0
    %679 = vmatprep.subr.mxu0 0.0
    %680 = vmatpush1.msra.mxu0 0.0
    %681 = vmatprep.subr.mxu0 0.0
    %682 = vmatpush1.msra.mxu0 0.0
    %683 = vmatprep.subr.mxu0 0.0
    %684 = vmatpush1.msra.mxu0 0.0
    %685 = vmatprep.subr.mxu0 0.0
    %686 = vmatpush1.msra.mxu0 0.0
    %687 = vmatprep.subr.mxu0 0.0
    %688 = vmatpush1.msra.mxu0 0.0
    %689 = vmatprep.subr.mxu0 0.0
    %690 = vmatpush1.msra.mxu0 0.0
    %691 = vmatprep.subr.mxu0 0.0
    %692 = vmatpush1.msra.mxu0 0.0
    %693 = vmatprep.subr.mxu0 0.0
    %694 = vmatpush1.msra.mxu0 0.0
    %695 = vmatprep.subr.mxu0 0.0
    %696 = vmatpush1.msra.mxu0 0.0
    %697 = vmatprep.subr.mxu0 0.0
    %698 = vmatpush1.msra.mxu0 0.0
    %699 = vmatprep.mubr.f32.mxu0 0.0
    %700 = vmatmul.mubr.f32.gmra.mrb[0].mxu0 %v610
    %v701 = vpop.f32.mrb[0].mxu0
    %v702 = vadd.f32 %v633, %v701
    %v703 = vpop.f32.mrb[0].mxu0
    %704 = vdwg.mxu0
    %705 = vmax.xlane.f32.xlu0 %v702
    %v706 = vpop.xlane.xlu0 %705
    %v707 = vsub.f32 %v702, %v706
    %v708 = vmul.f32 %v707, 1.442695
    %v709 = vpow.pop %v708
    %710 = vadd.xlane.f32.xlu0 %v709
    %v711 = vpop.xlane.xlu0 %710
    %v712 = vlog2.pop %v711
    %v713 = vmul.f32 %v712, 0.6931472
    %v714 = vadd.f32 %v706, %v713
    %v715 = vsub.f32 %v702, %v714
    %716 = vst [vmem:[#allocation10] sm:$0xff] %v715
    // Predicated region
    $region54: #{decoder_forward.1} parent=1 // pred_check
      _
    $region55: #{decoder_forward.1} parent=1 // pred_check_branch
      %718 = sbr.rel (0) target = $region57
    $region56: #{decoder_forward.1} parent=1 // pred_region
      %s720 = ssub.s32 128, 128
      %721 = vsyncadd [#allocation4], %s720
      %s723 = sshll.u32 [#allocation10], 4
      %s724 = int_to_ptr.vmem [resolvable:$true] %s723
      %726 = dma.vmem_to_hbm [thread:$0]  %s724, 128, %s9, [#allocation4]
    $region57: #{decoder_forward.1} parent=1 // pred_fallthru
      _
    // Predicated region
    $region58: #{decoder_forward.1} parent=1 // pred_check
      _
    $region59: #{decoder_forward.1} parent=1 // pred_check_branch
      %728 = sbr.rel (0) target = $region61
    $region60: #{decoder_forward.1} parent=1 // pred_region
      _
    $region61: #{decoder_forward.1} parent=1 // pred_fallthru
      _
    // Predicated region
    $region62: #{decoder_forward.1} parent=1 // pred_check
      _
    $region63: #{decoder_forward.1} parent=1 // pred_check_branch
      %730 = sbr.rel (0) target = $region65
    $region64: #{decoder_forward.1} parent=1 // pred_region
      %731 = dma.done [#allocation4], 128
    $region65: #{decoder_forward.1} parent=1 // pred_fallthru
      _
    // Predicated region
    $region66: #{decoder_forward.1} parent=1 // pred_check
      _
    $region67: #{decoder_forward.1} parent=1 // pred_check_branch
      %733 = sbr.rel (0) target = $region69
    $region68: #{decoder_forward.1} parent=1 // pred_region
      _
    $region69: #{decoder_forward.1} parent=1 // pred_fallthru
      _
    %734 = vsyncpa [#allocation3], 1
    %735 = vsyncpa [#allocation6], 1
    %736 = vsyncpa [#allocation9], 1
    %737 = vsyncpa [#allocation4], 1

</llo_original>
